<compile_context>
chip_gen: v7x
topology: tpu7x:2x2x1
jax: 0.10.0
libtpu: 0.0.40
codegen_flags: <defaults>
</compile_context>

<pallas_src>
import functools

import jax
import jax.numpy as jnp
from jax.experimental import pallas as pl
from jax.experimental.pallas import tpu as pltpu


def _round_up(x: int, m: int) -> int:
    return (x + m - 1) // m * m


def _pick_tile_m(B: int) -> int:
    """Big batch tiles amortize the ~0.35us/step pipeline overhead, but keep
    >=2 grid steps when the batch permits so both v7x TensorCores get work."""
    t = min(512, _round_up(B, 8))
    if B >= 16:
        t = min(t, _round_up((B + 1) // 2, 8))
    return max(t, 8)


def _pick_tn(Op: int) -> int:
    """Largest lane-dense (multiple-of-128) W2 column tile <=1024 dividing Op."""
    for cand in range(min(Op, 1024), 0, -128):
        if Op % cand == 0:
            return cand
    return Op


def pack_params(w1, b1, w2, b2, operand_dtype=jnp.bfloat16):
    """Pad feature dims to multiples of 128 and cast MXU operands to bf16 ONCE.

    w1: [latent, hidden], w2: [hidden, output]; biases may be [out] or [1, out].
    Zero padding is numerically exact (padded cols/rows contribute 0 and padded
    output columns are sliced off by the wrapper).
    """
    L, H = w1.shape
    O = w2.shape[1]
    Lp, Hp, Op = _round_up(L, 128), _round_up(H, 128), _round_up(O, 128)
    b1 = jnp.reshape(b1, (1, H))
    b2 = jnp.reshape(b2, (1, O))
    w1_p = jnp.pad(w1, ((0, Lp - L), (0, Hp - H))).astype(operand_dtype)
    w2_p = jnp.pad(w2, ((0, Hp - H), (0, Op - O))).astype(operand_dtype)
    b1_p = jnp.pad(b1, ((0, 0), (0, Hp - H))).astype(jnp.float32)
    b2_p = jnp.pad(b2, ((0, 0), (0, Op - O))).astype(jnp.float32)
    return w1_p, b1_p, w2_p, b2_p


def vae_decoder_kernel(z_ref, w1_ref, b1_ref, w2_ref, b2_ref, out_ref, h_ref):
    j = pl.program_id(1)

    @pl.when(j == 0)
    def _():
        # fc1 once per batch tile: cast f32 z on the VPU (free slot under the
        # MXU), MXU matmul with f32 accumulation, bias + ReLU in f32, store
        # the activation tile in the bf16 VMEM scratch for reuse across j.
        h = jnp.dot(z_ref[...].astype(w1_ref.dtype), w1_ref[...],
                    preferred_element_type=jnp.float32)
        h = jnp.maximum(h + b1_ref[...], 0.0)
        h_ref[...] = h.astype(h_ref.dtype)

    # fc2 column tile: h @ W2[:, j*tn:(j+1)*tn] + b2[j-tile].
    o = jnp.dot(h_ref[...], w2_ref[...], preferred_element_type=jnp.float32)
    out_ref[...] = (o + b2_ref[...]).astype(out_ref.dtype)


def vae_decoder(z, w1_p, b1_p, w2_p, b2_p, *, out_features,
                hidden_features=None, tile_m=None, tn=None,
                operand_dtype=jnp.bfloat16, out_dtype=jnp.float32):
    """z: [B, latent] (f32); padded/cast params from pack_params().
    Returns [B, out_features] in out_dtype (f32 default; pass bf16 to halve
    output HBM store traffic if the consumer accepts it)."""
    B, L = z.shape
    Lp, Hp = w1_p.shape
    Op = w2_p.shape[1]
    O = out_features
    H = hidden_features if hidden_features is not None else Hp

    if tile_m is None:
        tile_m = _pick_tile_m(B)
    if tn is None:
        tn = _pick_tn(Op)
    Bp = _round_up(B, tile_m)

    # Pad z (f32, no dtype-convert pass) only if the trailing batch tile or
    # latent columns actually need it; the kernel casts to bf16 on the VPU.
    if Bp != B or Lp != L:
        z_in = jnp.pad(z, ((0, Bp - B), (0, Lp - L)))
    else:
        z_in = z

    grid = (Bp // tile_m, Op // tn)

    opb = jnp.dtype(operand_dtype).itemsize
    outb = jnp.dtype(out_dtype).itemsize
    zb = z_in.dtype.itemsize
    # VMEM footprint with single-buffered resident W1/b1, double-buffered
    # streamed tiles, the bf16 activation scratch and f32 body temporaries.
    footprint = (2 * tile_m * Lp * zb                     # z tiles (dbl-buf)
                 + Lp * Hp * opb + Hp * 4                 # W1/b1 (single-buf)
                 + 2 * (Hp * tn * opb + tn * 4)           # W2/b2 tiles (dbl-buf)
                 + 2 * tile_m * tn * outb                 # out tiles (dbl-buf)
                 + tile_m * Hp * opb                      # h scratch
                 + tile_m * max(Hp, tn) * 4)              # f32 temporaries
    try:
        cap = int(getattr(pltpu.get_tpu_info(), "vmem_capacity_bytes",
                          64 * 1024 * 1024))
    except Exception:
        cap = 64 * 1024 * 1024                            # v7x per-TC VMEM
    vmem_limit = min(max(int(1.25 * footprint), 32 * 1024 * 1024),
                     int(0.85 * cap))

    # Advisory cost from the TRUE (unpadded) dims and real HBM bytes moved.
    cost = pl.CostEstimate(
        flops=2 * B * L * H + 2 * B * H * O,
        transcendentals=0,
        bytes_accessed=(B * L * zb + w1_p.size * opb + w2_p.size * opb
                        + b1_p.size * 4 + b2_p.size * 4 + B * O * outb),
    )

    out_p = pl.pallas_call(
        vae_decoder_kernel,
        out_shape=jax.ShapeDtypeStruct((Bp, Op), out_dtype),
        grid_spec=pltpu.PrefetchScalarGridSpec(
            num_scalar_prefetch=0,
            grid=grid,
            in_specs=[
                # z tile streams over the batch axis (f32, cast in-kernel).
                pl.BlockSpec((tile_m, Lp), lambda i, j: (i, 0)),
                # W1 / b1: constant index -> single-buffer (fetched once).
                pl.BlockSpec((Lp, Hp), lambda i, j: (0, 0),
                             pipeline_mode=pl.Buffered(1)),
                pl.BlockSpec((1, Hp), lambda i, j: (0, 0),
                             pipeline_mode=pl.Buffered(1)),
                # W2 / b2: lane-dense column tiles streamed over j.
                pl.BlockSpec((Hp, tn), lambda i, j: (0, j)),
                pl.BlockSpec((1, tn), lambda i, j: (0, j)),
            ],
            out_specs=pl.BlockSpec((tile_m, tn), lambda i, j: (i, j)),
            scratch_shapes=[pltpu.VMEM((tile_m, Hp), operand_dtype)],
        ),
        compiler_params=pltpu.CompilerParams(
            # batch axis parallel (v7x megacore); j must run in-order per i
            # because the fc1 scratch is written only at j == 0.
            dimension_semantics=("parallel", "arbitrary"),
            vmem_limit_bytes=vmem_limit,
        ),
        cost_estimate=cost,
    )(z_in, w1_p, b1_p, w2_p, b2_p)

    return out_p[:B, :O]


def init_params(key, latent_size, hidden_size, output_size, dtype=jnp.float32):
    """Deterministic init matching nn.Linear shapes (kaiming-uniform-ish),
    stored as [in, out] / [1, out]."""
    k1, k2, k3, k4 = jax.random.split(key, 4)
    lim1 = 1.0 / (latent_size ** 0.5)
    lim2 = 1.0 / (hidden_size ** 0.5)
    w1 = jax.random.uniform(k1, (latent_size, hidden_size), dtype,
                            minval=-lim1, maxval=lim1)
    b1 = jax.random.uniform(k2, (1, hidden_size), dtype,
                            minval=-lim1, maxval=lim1)
    w2 = jax.random.uniform(k3, (hidden_size, output_size), dtype,
                            minval=-lim2, maxval=lim2)
    b2 = jax.random.uniform(k4, (1, output_size), dtype,
                            minval=-lim2, maxval=lim2)
    return w1, b1, w2, b2


def vae_decoder_ref(z, w1, b1, w2, b2):
    h = jnp.maximum(z @ w1 + b1, 0.0)
    return h @ w2 + b2


if __name__ == "__main__":
    latent_size, hidden_size, output_size = 16, 32, 64
    batch = 8

    key = jax.random.PRNGKey(0)
    kz, kp = jax.random.split(key)
    z = jax.random.normal(kz, (batch, latent_size), dtype=jnp.float32)
    w1, b1, w2, b2 = init_params(kp, latent_size, hidden_size, output_size)

    # Pad + cast the weights ONCE (hoisted out of the forward pass).
    packed = pack_params(w1, b1, w2, b2)

    fwd = jax.jit(functools.partial(vae_decoder,
                                    out_features=output_size,
                                    hidden_features=hidden_size))
    out = fwd(z, *packed)
    out = jax.block_until_ready(out)

    ref = vae_decoder_ref(z, w1, b1, w2, b2)
    assert out.shape == (batch, output_size)
    # bf16 MXU operands with f32 accumulation -> compare with looser tolerance.
    assert jnp.allclose(out, ref, atol=2e-2, rtol=2e-2), float(
        jnp.max(jnp.abs(out - ref)))

    print("KERNEL_OK")
</pallas_src>

<mosaic_0001>
module attributes {stable_mosaic.version = 11 : i64} {
  func.func @vae_decoder_kernel(%arg0: i32, %arg1: i32, %arg2: memref<8x128xf32, #tpu.memory_space<vmem>>, %arg3: memref<128x128xbf16, #tpu.memory_space<vmem>>, %arg4: memref<1x128xf32, #tpu.memory_space<vmem>>, %arg5: memref<128x128xbf16, #tpu.memory_space<vmem>>, %arg6: memref<1x128xf32, #tpu.memory_space<vmem>>, %arg7: memref<8x128xf32, #tpu.memory_space<vmem>>, %arg8: memref<8x128xbf16, #tpu.memory_space<vmem>>) attributes {dimension_semantics = [#tpu.dimension_semantics<parallel>, #tpu.dimension_semantics<arbitrary>], iteration_bounds = array<i64: 1, 1>, scalar_prefetch = 0 : i64, scratch_operands = 1 : i64, tpu.core_type = #tpu.core_type<tc>, window_params = [{transform_indices = @transform_0, window_bounds = array<i64: 8, 128>}, {pipeline_mode = #tpu.pipeline_mode<synchronous>, transform_indices = @transform_1, window_bounds = array<i64: 128, 128>}, {pipeline_mode = #tpu.pipeline_mode<synchronous>, transform_indices = @transform_2, window_bounds = array<i64: 1, 128>}, {transform_indices = @transform_3, window_bounds = array<i64: 128, 128>}, {transform_indices = @transform_4, window_bounds = array<i64: 1, 128>}, {transform_indices = @transform_5, window_bounds = array<i64: 8, 128>}]} {
    %c0_i32 = arith.constant 0 : i32
    %0 = arith.cmpi eq, %arg1, %c0_i32 : i32
    %1 = arith.extui %0 : i1 to i32
    %c0_i32_0 = arith.constant 0 : i32
    %2 = arith.cmpi ne, %1, %c0_i32_0 : i32
    scf.if %2 {
      %c0_8 = arith.constant 0 : index
      %c0_9 = arith.constant 0 : index
      %10 = vector.load %arg2[%c0_8, %c0_9] : memref<8x128xf32, #tpu.memory_space<vmem>>, vector<8x128xf32>
      %11 = arith.truncf %10 : vector<8x128xf32> to vector<8x128xbf16>
      %c0_10 = arith.constant 0 : index
      %c0_11 = arith.constant 0 : index
      %12 = vector.load %arg3[%c0_10, %c0_11] : memref<128x128xbf16, #tpu.memory_space<vmem>>, vector<128x128xbf16>
      %cst_12 = arith.constant dense<0.000000e+00> : vector<8x128xf32>
      %13 = tpu.matmul %11, %12, %cst_12 {dimension_numbers = #tpu.dot_dimension_numbers<[1], [0], [0], [1], [0, 0, 1, 1], [], []>} : vector<8x128xbf16>, vector<128x128xbf16>, vector<8x128xf32> -> vector<8x128xf32>
      %c0_13 = arith.constant 0 : index
      %c0_14 = arith.constant 0 : index
      %14 = vector.load %arg4[%c0_13, %c0_14] : memref<1x128xf32, #tpu.memory_space<vmem>>, vector<1x128xf32>
      %15 = vector.broadcast %14 : vector<1x128xf32> to vector<8x128xf32>
      %16 = arith.addf %13, %15 : vector<8x128xf32>
      %cst_15 = arith.constant 0.000000e+00 : f32
      %17 = vector.broadcast %cst_15 : f32 to vector<8x128xf32>
      %18 = arith.maximumf %16, %17 : vector<8x128xf32>
      %19 = arith.truncf %18 : vector<8x128xf32> to vector<8x128xbf16>
      %c0_16 = arith.constant 0 : index
      %c0_17 = arith.constant 0 : index
      %20 = vector.load %arg8[%c0_16, %c0_17] : memref<8x128xbf16, #tpu.memory_space<vmem>>, vector<8x128xbf16>
      tpu.vector_store %arg8[%c0_16, %c0_17], %19 {strides = array<i32>} : memref<8x128xbf16, #tpu.memory_space<vmem>>, vector<8x128xbf16>,
    } else {
    }
    %c0 = arith.constant 0 : index
    %c0_1 = arith.constant 0 : index
    %3 = vector.load %arg8[%c0, %c0_1] : memref<8x128xbf16, #tpu.memory_space<vmem>>, vector<8x128xbf16>
    %c0_2 = arith.constant 0 : index
    %c0_3 = arith.constant 0 : index
    %4 = vector.load %arg5[%c0_2, %c0_3] : memref<128x128xbf16, #tpu.memory_space<vmem>>, vector<128x128xbf16>
    %cst = arith.constant dense<0.000000e+00> : vector<8x128xf32>
    %5 = tpu.matmul %3, %4, %cst {dimension_numbers = #tpu.dot_dimension_numbers<[1], [0], [0], [1], [0, 0, 1, 1], [], []>} : vector<8x128xbf16>, vector<128x128xbf16>, vector<8x128xf32> -> vector<8x128xf32>
    %c0_4 = arith.constant 0 : index
    %c0_5 = arith.constant 0 : index
    %6 = vector.load %arg6[%c0_4, %c0_5] : memref<1x128xf32, #tpu.memory_space<vmem>>, vector<1x128xf32>
    %7 = vector.broadcast %6 : vector<1x128xf32> to vector<8x128xf32>
    %8 = arith.addf %5, %7 : vector<8x128xf32>
    %c0_6 = arith.constant 0 : index
    %c0_7 = arith.constant 0 : index
    %9 = vector.load %arg7[%c0_6, %c0_7] : memref<8x128xf32, #tpu.memory_space<vmem>>, vector<8x128xf32>
    tpu.vector_store %arg7[%c0_6, %c0_7], %8 {strides = array<i32>} : memref<8x128xf32, #tpu.memory_space<vmem>>, vector<8x128xf32>,
    return
  }
  func.func @transform_0(%arg0: i32, %arg1: i32) -> (i32, i32) {
    %c0_i32 = arith.constant 0 : i32
    %c0_i32_0 = arith.constant 0 : i32
    return %arg0, %c0_i32 : i32, i32
  }
  func.func @transform_1(%arg0: i32, %arg1: i32) -> (i32, i32) {
    %c0_i32 = arith.constant 0 : i32
    %c0_i32_0 = arith.constant 0 : i32
    %c0_i32_1 = arith.constant 0 : i32
    return %c0_i32, %c0_i32_0 : i32, i32
  }
  func.func @transform_2(%arg0: i32, %arg1: i32) -> (i32, i32) {
    %c0_i32 = arith.constant 0 : i32
    %c0_i32_0 = arith.constant 0 : i32
    %c0_i32_1 = arith.constant 0 : i32
    return %c0_i32, %c0_i32_0 : i32, i32
  }
  func.func @transform_3(%arg0: i32, %arg1: i32) -> (i32, i32) {
    %c0_i32 = arith.constant 0 : i32
    %c0_i32_0 = arith.constant 0 : i32
    return %c0_i32, %arg1 : i32, i32
  }
  func.func @transform_4(%arg0: i32, %arg1: i32) -> (i32, i32) {
    %c0_i32 = arith.constant 0 : i32
    %c0_i32_0 = arith.constant 0 : i32
    return %c0_i32, %arg1 : i32, i32
  }
  func.func @transform_5(%arg0: i32, %arg1: i32) -> (i32, i32) {
    %c0_i32 = arith.constant 0 : i32
    return %arg0, %arg1 : i32, i32
  }
}

</mosaic_0001>

<llo_original>
// kernel: vae_decoder.1
$region0: #{vae_decoder.1}
  #allocation0 [shape = 'u32[]', space=smem, size = 0x4, offset = 0x4, fixed_abs, tag = 'smem constant byte address 0x4 - core index']
  #allocation1 [shape = 'u32[144,128]{1,0:T(1,128)}', space=vmem, size = 0x12000, scoped, tag = 'internal scratch']
  #allocation2 [shape = 'bf16[8,128]{1,0:T(8,128)(2,1)}', space=vmem, size = 0x800, scoped, tag = 'scratch operand']
  %s0 = inlined_call_operand.vmem [shape: f32[8,128], index: 0, kind: input, shape index: {}]
  %s1 = inlined_call_operand.hbm [shape: bf16[128,128], index: 1, kind: input, shape index: {}]
  %s2 = inlined_call_operand.vmem [shape: f32[1,128], index: 2, kind: input, shape index: {}]
  %s3 = inlined_call_operand.hbm [shape: bf16[128,128], index: 3, kind: input, shape index: {}]
  %s4 = inlined_call_operand.vmem [shape: f32[1,128], index: 4, kind: input, shape index: {}]
  %s5 = inlined_call_operand.hbm [shape: f32[8,128], index: 5, kind: output, shape index: {}]
  %s6 = sld [smem:[#allocation0]]
  $region42: #{vae_decoder.1} parent=0
    _
  %s8 = ssub.s32 1, %s6
  %s9 = scalar_select 0, %s8, %s6
  $region1: #{vae_decoder.1} parent=0
    #allocation3 [shape = 'u8[32768]{0}', space=vmem, size = 0x8000, scoped, tag = 'input window, operand 1, single buffered']
    #allocation4 [shape = 's32[1]{0}', space=sflag, size = 0x4, scoped, tag = 'scoped memory for vae_decoder.1']
    #allocation5 [shape = 's32[1]{0}', space=sflag, size = 0x4, scoped, tag = 'scoped memory for vae_decoder.1']
    #allocation6 [shape = 'u8[32768]{0}', space=vmem, size = 0x8000, scoped, tag = 'input window, operand 3, single buffered']
    #allocation7 [shape = 's32[1]{0}', space=sflag, size = 0x4, scoped, tag = 'scoped memory for vae_decoder.1']
    #allocation8 [shape = 'u8[4096]{0}', space=vmem, size = 0x1000, scoped, tag = 'output window, operand 0, single buffered']
    %10 = vsyncpa [#allocation4], 0
    %11 = vsyncpa [#allocation7], 0
    %12 = vsyncpa [#allocation5], 0
    // Predicated region
    $region2: #{vae_decoder.1} parent=1 // pred_check
      _
    $region3: #{vae_decoder.1} parent=1 // pred_check_branch
      %14 = sbr.rel (0) target = $region5
    $region4: #{vae_decoder.1} parent=1 // pred_region
      _
    $region5: #{vae_decoder.1} parent=1 // pred_fallthru
      _
    // Predicated region
    $region6: #{vae_decoder.1} parent=1 // pred_check
      _
    $region7: #{vae_decoder.1} parent=1 // pred_check_branch
      %16 = sbr.rel (0) target = $region9
    $region8: #{vae_decoder.1} parent=1 // pred_region
      %s18 = ssub.s32 1024, 1024
      %19 = vsyncadd [#allocation4], %s18
      %s20 = sshll.u32 [#allocation3], 4
      %s21 = int_to_ptr.vmem [resolvable:$true] %s20
      %26 = dma.hbm_to_vmem [thread:$0]  %s1, 1024, %s21, [#allocation4], 64, 64, 4
    $region9: #{vae_decoder.1} parent=1 // pred_fallthru
      _
    // Predicated region
    $region10: #{vae_decoder.1} parent=1 // pred_check
      _
    $region11: #{vae_decoder.1} parent=1 // pred_check_branch
      %28 = sbr.rel (0) target = $region13
    $region12: #{vae_decoder.1} parent=1 // pred_region
      _
    $region13: #{vae_decoder.1} parent=1 // pred_fallthru
      _
    // Predicated region
    $region14: #{vae_decoder.1} parent=1 // pred_check
      _
    $region15: #{vae_decoder.1} parent=1 // pred_check_branch
      %30 = sbr.rel (0) target = $region17
    $region16: #{vae_decoder.1} parent=1 // pred_region
      %s32 = ssub.s32 1024, 1024
      %33 = vsyncadd [#allocation7], %s32
      %s34 = sshll.u32 [#allocation6], 4
      %s35 = int_to_ptr.vmem [resolvable:$true] %s34
      %40 = dma.hbm_to_vmem [thread:$0]  %s3, 1024, %s35, [#allocation7], 64, 64, 4
    $region17: #{vae_decoder.1} parent=1 // pred_fallthru
      _
    // Predicated region
    $region18: #{vae_decoder.1} parent=1 // pred_check
      _
    $region19: #{vae_decoder.1} parent=1 // pred_check_branch
      %42 = sbr.rel (0) target = $region21
    $region20: #{vae_decoder.1} parent=1 // pred_region
      _
    $region21: #{vae_decoder.1} parent=1 // pred_fallthru
      _
    // Predicated region
    $region22: #{vae_decoder.1} parent=1 // pred_check
      _
    $region23: #{vae_decoder.1} parent=1 // pred_check_branch
      %44 = sbr.rel (0) target = $region25
    $region24: #{vae_decoder.1} parent=1 // pred_region
      %45 = dma.done [#allocation4], 1024
    $region25: #{vae_decoder.1} parent=1 // pred_fallthru
      _
    // Predicated region
    $region26: #{vae_decoder.1} parent=1 // pred_check
      _
    $region27: #{vae_decoder.1} parent=1 // pred_check_branch
      %47 = sbr.rel (0) target = $region29
    $region28: #{vae_decoder.1} parent=1 // pred_region
      %48 = dma.done [#allocation7], 1024
    $region29: #{vae_decoder.1} parent=1 // pred_fallthru
      _
    %p50 = scmp.eq.s32.totalorder 0, 0
    // Predicated region
    $region30: #{vae_decoder.1} parent=1 // pred_check
      %p51 = pneg %p50
    $region31: #{vae_decoder.1} parent=1 // pred_check_branch
      %53 = sbr.rel (%p51) target = $region33
    $region32: #{vae_decoder.1} parent=1 // pred_region
      %v54 = vld [vmem:[%s0] sm:$0xff]
      %v55 = vpack.c.bf16 %v54, %v54
      %v56 = vld [vmem:[#allocation3] sm:$0xf]
      %v57 = vld [vmem:[#allocation3 + $0x4] sm:$0xf]
      %v58 = vld [vmem:[#allocation3 + $0x8] sm:$0xf]
      %v59 = vld [vmem:[#allocation3 + $0xc] sm:$0xf]
      %v60 = vld [vmem:[#allocation3 + $0x10] sm:$0xf]
      %v61 = vld [vmem:[#allocation3 + $0x14] sm:$0xf]
      %v62 = vld [vmem:[#allocation3 + $0x18] sm:$0xf]
      %v63 = vld [vmem:[#allocation3 + $0x1c] sm:$0xf]
      %v64 = vld [vmem:[#allocation3 + $0x20] sm:$0xf]
      %v65 = vld [vmem:[#allocation3 + $0x24] sm:$0xf]
      %v66 = vld [vmem:[#allocation3 + $0x28] sm:$0xf]
      %v67 = vld [vmem:[#allocation3 + $0x2c] sm:$0xf]
      %v68 = vld [vmem:[#allocation3 + $0x30] sm:$0xf]
      %v69 = vld [vmem:[#allocation3 + $0x34] sm:$0xf]
      %v70 = vld [vmem:[#allocation3 + $0x38] sm:$0xf]
      %v71 = vld [vmem:[#allocation3 + $0x3c] sm:$0xf]
      %v72 = vld [vmem:[%s2] sm:$0x1]
      %v74 = vlaneseq
      %v75 = vshrl.u32 %v74, 7
      %v76 = vsub.s32 0, %v75
      %v77 = vrot.slane %v72, %v76
      %v95 = vunpack.c.l.b16 %v56
      %v96 = vunpack.c.l.b16 %v57
      %v97 = vunpack.c.l.b16 %v58
      %v98 = vunpack.c.l.b16 %v59
      %v99 = vunpack.c.l.b16 %v60
      %v100 = vunpack.c.l.b16 %v61
      %v101 = vunpack.c.l.b16 %v62
      %v102 = vunpack.c.l.b16 %v63
      %v103 = vunpack.c.l.b16 %v64
      %v104 = vunpack.c.l.b16 %v65
      %v105 = vunpack.c.l.b16 %v66
      %v106 = vunpack.c.l.b16 %v67
      %v107 = vunpack.c.l.b16 %v68
      %v108 = vunpack.c.l.b16 %v69
      %v109 = vunpack.c.l.b16 %v70
      %v110 = vunpack.c.l.b16 %v71
      %v111 = vpack.c.b16 %v96, %v95
      %v112 = vpack.c.b16 %v98, %v97
      %v113 = vpack.c.b16 %v100, %v99
      %v114 = vpack.c.b16 %v102, %v101
      %v115 = vpack.c.b16 %v104, %v103
      %v116 = vpack.c.b16 %v106, %v105
      %v117 = vpack.c.b16 %v108, %v107
      %v118 = vpack.c.b16 %v110, %v109
      %127 = vmatprep.subr.bf16.mxu0 0
      %128 = vmatpush1.bf16.msra.mxu0 %v111
      %129 = vmatprep.subr.bf16.mxu0 0
      %130 = vmatpush1.bf16.msra.mxu0 %v112
      %131 = vmatprep.subr.bf16.mxu0 0
      %132 = vmatpush1.bf16.msra.mxu0 %v113
      %133 = vmatprep.subr.bf16.mxu0 0
      %134 = vmatpush1.bf16.msra.mxu0 %v114
      %135 = vmatprep.subr.bf16.mxu0 0
      %136 = vmatpush1.bf16.msra.mxu0 %v115
      %137 = vmatprep.subr.bf16.mxu0 0
      %138 = vmatpush1.bf16.msra.mxu0 %v116
      %139 = vmatprep.subr.bf16.mxu0 0
      %140 = vmatpush1.bf16.msra.mxu0 %v117
      %141 = vmatprep.subr.bf16.mxu0 0
      %142 = vmatpush1.bf16.msra.mxu0 %v118
      %143 = vmatprep.subr.bf16.mxu0 0
      %144 = vmatpush1.bf16.msra.mxu0 0
      %145 = vmatprep.subr.bf16.mxu0 0
      %146 = vmatpush1.bf16.msra.mxu0 0
      %147 = vmatprep.subr.bf16.mxu0 0
      %148 = vmatpush1.bf16.msra.mxu0 0
      %149 = vmatprep.subr.bf16.mxu0 0
      %150 = vmatpush1.bf16.msra.mxu0 0
      %151 = vmatprep.subr.bf16.mxu0 0
      %152 = vmatpush1.bf16.msra.mxu0 0
      %153 = vmatprep.subr.bf16.mxu0 0
      %154 = vmatpush1.bf16.msra.mxu0 0
      %155 = vmatprep.subr.bf16.mxu0 0
      %156 = vmatpush1.bf16.msra.mxu0 0
      %157 = vmatprep.subr.bf16.mxu0 0
      %158 = vmatpush1.bf16.msra.mxu0 0
      %159 = vmatprep.mubr.bf16.mxu0 0
      %160 = vmatmul.mubr.bf16.gmra.mrb[0].mxu0 %v55
      %v161 = vpop.f32.mrb[0].mxu0
      %v162 = vadd.f32 %v77, %v161
      %v163 = vpop.f32.mrb[0].mxu0
      %v164 = vpop.f32.mrb[0].mxu0
      %v165 = vpop.f32.mrb[0].mxu0
      %166 = vdwg.mxu0
      %v167 = vmax.f32 %v162, 0.0
      %v168 = vpack.c.bf16 %v167, %v167
      %169 = vst [vmem:[#allocation2] sm:$0xf] %v168
    $region33: #{vae_decoder.1} parent=1 // pred_fallthru
      _
    %v170 = vld [vmem:[#allocation2] sm:$0xf]
    %v171 = vld [vmem:[#allocation6] sm:$0xf]
    %v172 = vld [vmem:[#allocation6 + $0x4] sm:$0xf]
    %v173 = vld [vmem:[#allocation6 + $0x8] sm:$0xf]
    %v174 = vld [vmem:[#allocation6 + $0xc] sm:$0xf]
    %v175 = vld [vmem:[#allocation6 + $0x10] sm:$0xf]
    %v176 = vld [vmem:[#allocation6 + $0x14] sm:$0xf]
    %v177 = vld [vmem:[#allocation6 + $0x18] sm:$0xf]
    %v178 = vld [vmem:[#allocation6 + $0x1c] sm:$0xf]
    %v179 = vld [vmem:[#allocation6 + $0x20] sm:$0xf]
    %v180 = vld [vmem:[#allocation6 + $0x24] sm:$0xf]
    %v181 = vld [vmem:[#allocation6 + $0x28] sm:$0xf]
    %v182 = vld [vmem:[#allocation6 + $0x2c] sm:$0xf]
    %v183 = vld [vmem:[#allocation6 + $0x30] sm:$0xf]
    %v184 = vld [vmem:[#allocation6 + $0x34] sm:$0xf]
    %v185 = vld [vmem:[#allocation6 + $0x38] sm:$0xf]
    %v186 = vld [vmem:[#allocation6 + $0x3c] sm:$0xf]
    %v187 = vld [vmem:[%s4] sm:$0x1]
    %v189 = vlaneseq
    %v190 = vshrl.u32 %v189, 7
    %v191 = vsub.s32 0, %v190
    %v192 = vrot.slane %v187, %v191
    %v210 = vunpack.c.l.b16 %v171
    %v211 = vunpack.c.l.b16 %v172
    %v212 = vunpack.c.l.b16 %v173
    %v213 = vunpack.c.l.b16 %v174
    %v214 = vunpack.c.l.b16 %v175
    %v215 = vunpack.c.l.b16 %v176
    %v216 = vunpack.c.l.b16 %v177
    %v217 = vunpack.c.l.b16 %v178
    %v218 = vunpack.c.l.b16 %v179
    %v219 = vunpack.c.l.b16 %v180
    %v220 = vunpack.c.l.b16 %v181
    %v221 = vunpack.c.l.b16 %v182
    %v222 = vunpack.c.l.b16 %v183
    %v223 = vunpack.c.l.b16 %v184
    %v224 = vunpack.c.l.b16 %v185
    %v225 = vunpack.c.l.b16 %v186
    %v226 = vpack.c.b16 %v211, %v210
    %v227 = vpack.c.b16 %v213, %v212
    %v228 = vpack.c.b16 %v215, %v214
    %v229 = vpack.c.b16 %v217, %v216
    %v230 = vpack.c.b16 %v219, %v218
    %v231 = vpack.c.b16 %v221, %v220
    %v232 = vpack.c.b16 %v223, %v222
    %v233 = vpack.c.b16 %v225, %v224
    %242 = vmatprep.subr.bf16.mxu0 0
    %243 = vmatpush1.bf16.msra.mxu0 %v226
    %244 = vmatprep.subr.bf16.mxu0 0
    %245 = vmatpush1.bf16.msra.mxu0 %v227
    %246 = vmatprep.subr.bf16.mxu0 0
    %247 = vmatpush1.bf16.msra.mxu0 %v228
    %248 = vmatprep.subr.bf16.mxu0 0
    %249 = vmatpush1.bf16.msra.mxu0 %v229
    %250 = vmatprep.subr.bf16.mxu0 0
    %251 = vmatpush1.bf16.msra.mxu0 %v230
    %252 = vmatprep.subr.bf16.mxu0 0
    %253 = vmatpush1.bf16.msra.mxu0 %v231
    %254 = vmatprep.subr.bf16.mxu0 0
    %255 = vmatpush1.bf16.msra.mxu0 %v232
    %256 = vmatprep.subr.bf16.mxu0 0
    %257 = vmatpush1.bf16.msra.mxu0 %v233
    %258 = vmatprep.subr.bf16.mxu0 0
    %259 = vmatpush1.bf16.msra.mxu0 0
    %260 = vmatprep.subr.bf16.mxu0 0
    %261 = vmatpush1.bf16.msra.mxu0 0
    %262 = vmatprep.subr.bf16.mxu0 0
    %263 = vmatpush1.bf16.msra.mxu0 0
    %264 = vmatprep.subr.bf16.mxu0 0
    %265 = vmatpush1.bf16.msra.mxu0 0
    %266 = vmatprep.subr.bf16.mxu0 0
    %267 = vmatpush1.bf16.msra.mxu0 0
    %268 = vmatprep.subr.bf16.mxu0 0
    %269 = vmatpush1.bf16.msra.mxu0 0
    %270 = vmatprep.subr.bf16.mxu0 0
    %271 = vmatpush1.bf16.msra.mxu0 0
    %272 = vmatprep.subr.bf16.mxu0 0
    %273 = vmatpush1.bf16.msra.mxu0 0
    %274 = vmatprep.mubr.bf16.mxu0 0
    %275 = vmatmul.mubr.bf16.gmra.mrb[0].mxu0 %v170
    %v276 = vpop.f32.mrb[0].mxu0
    %v277 = vadd.f32 %v192, %v276
    %v278 = vpop.f32.mrb[0].mxu0
    %v279 = vpop.f32.mrb[0].mxu0
    %v280 = vpop.f32.mrb[0].mxu0
    %281 = vdwg.mxu0
    %282 = vst [vmem:[#allocation8] sm:$0xff] %v277
    // Predicated region
    $region34: #{vae_decoder.1} parent=1 // pred_check
      _
    $region35: #{vae_decoder.1} parent=1 // pred_check_branch
      %284 = sbr.rel (0) target = $region37
    $region36: #{vae_decoder.1} parent=1 // pred_region
      %s286 = ssub.s32 128, 128
      %287 = vsyncadd [#allocation5], %s286
      %s289 = sshll.u32 [#allocation8], 4
      %s290 = int_to_ptr.vmem [resolvable:$true] %s289
      %292 = dma.vmem_to_hbm [thread:$0]  %s290, 128, %s5, [#allocation5]
    $region37: #{vae_decoder.1} parent=1 // pred_fallthru
      _
    // Predicated region
    $region38: #{vae_decoder.1} parent=1 // pred_check
      _
    $region39: #{vae_decoder.1} parent=1 // pred_check_branch
      %294 = sbr.rel (0) target = $region41
    $region40: #{vae_decoder.1} parent=1 // pred_region
      %295 = dma.done [#allocation5], 128
    $region41: #{vae_decoder.1} parent=1 // pred_fallthru
      _
    %296 = vsyncpa [#allocation4], 1
    %297 = vsyncpa [#allocation7], 1
    %298 = vsyncpa [#allocation5], 1

</llo_original>
